<compile_context>
chip_gen: v5e
topology: v5e:2x2
jax: 0.10.0
libtpu: 0.0.40
codegen_flags: <defaults>
</compile_context>

<pallas_src>
import math
import functools

import jax
import jax.numpy as jnp
from jax import lax
from jax.experimental import pallas as pl
from jax.experimental.pallas import tpu as pltpu


def _round_up(x, m):
    return (x + m - 1) // m * m


def _vmem_budget_and_limit():
    """Generation-aware VMEM working-set budget and vmem_limit_bytes."""
    try:
        cap = int(pltpu.get_tpu_info().vmem_capacity_bytes)
    except Exception:
        cap = 64 * 1024 * 1024          # conservative default (v7x per-TC VMEM)
    cap = max(cap, 32 * 1024 * 1024)
    budget = (cap * 3) // 4             # ~96 MiB on v5e/v6e, ~48 MiB on v7x
    limit = min(cap - (8 << 20), budget + (16 << 20))   # ~112 MiB / ~56 MiB
    return budget, limit


# ---------------------------------------------------------------------------
# Path A: small vocab — table resident in VMEM, gather as one-hot MXU matmul.
# ---------------------------------------------------------------------------
def _onehot_kernel(idx_ref, table_ref, out_ref, *, scale):
    # idx_ref  : (TM, 1) int32 token ids for this tile (VMEM)
    # table_ref: (vocab_pad, d_model) full padded table, resident in VMEM
    # out_ref  : (TM, d_model) output tile
    tm = out_ref.shape[0]
    vocab_pad = table_ref.shape[0]
    ids = idx_ref[...]                                           # (TM, 1)
    col = lax.broadcasted_iota(jnp.int32, (tm, vocab_pad), 1)
    # Exact {0,1} one-hot in table dtype; padded / OOB ids match no valid row.
    onehot = (col == ids).astype(table_ref.dtype)
    acc = jnp.dot(onehot, table_ref[...], preferred_element_type=jnp.float32)
    # Scale applied once, in f32, at finalize (not rounded into the one-hot).
    out_ref[...] = (acc * scale).astype(out_ref.dtype)


# ---------------------------------------------------------------------------
# Path B: large vocab — table stays in HBM, per-token row gather via DMA.
# ---------------------------------------------------------------------------
def _gather_kernel(ids_ref, table_hbm, out_ref, row_buf, sem, *, tm, scale):
    # ids_ref  : (n_pad_tokens,) int32 ids in SMEM (scalar prefetch)
    # table_hbm: (vocab, d_model) embedding table left in HBM (pl.ANY)
    # out_ref  : (TM, d_model) output tile (VMEM, auto-pipelined)
    # row_buf  : (2, TM, d_model) VMEM gather destination (double buffer)
    # sem      : (2,) DMA semaphores (byte-counted), one per slot
    i = pl.program_id(0)
    nt = pl.num_programs(0)

    def issue_tile(tile, slot):
        base = tile * tm

        @pl.loop(0, tm)
        def _(t):
            tok = ids_ref[base + t]
            pltpu.make_async_copy(
                table_hbm.at[pl.ds(tok, 1)],            # (1, d_model) row
                row_buf.at[slot, pl.ds(t, 1)],
                sem.at[slot],
            ).start()

    @pl.when(i == 0)
    def _():
        issue_tile(0, 0)

    # Prefetch the next tile's rows before waiting for the current tile.
    @pl.when(i + 1 < nt)
    def _():
        issue_tile(i + 1, (i + 1) % 2)

    slot = i % 2
    # One wait for the whole tile: DMA semaphores count bytes, and the TM row
    # copies into row_buf[slot] sum to exactly its size.
    pltpu.make_async_copy(row_buf.at[slot], row_buf.at[slot], sem.at[slot]).wait()
    out_ref[...] = (row_buf[slot].astype(jnp.float32) * scale).astype(out_ref.dtype)


def embedding_forward(x, table, *, tm=256, use_gather=None):
    """x: (B, S) integer token ids; table: (vocab, d_model). Returns (B, S, d_model)."""
    B, S = x.shape
    vocab, d_model = table.shape
    scale = float(math.sqrt(d_model))
    out_dtype = table.dtype
    itemsize = jnp.dtype(out_dtype).itemsize

    budget, hw_vmem_limit = _vmem_budget_and_limit()

    N = B * S
    # Token tile: multiple of 8, clamped to the problem size and so the gather
    # working set (rows + out tiles + f32 temporaries) stays inside VMEM.
    max_tm = max(8, (budget // (6 * d_model * max(itemsize, 4))) // 8 * 8)
    tm = max(8, _round_up(min(tm, max_tm, _round_up(N, 8)), 8))
    num_token_tiles = pl.cdiv(N, tm)
    n_pad_tokens = num_token_tiles * tm

    idx = jnp.reshape(x, (N,)).astype(jnp.int32)
    if n_pad_tokens != N:
        idx = jnp.pad(idx, (0, n_pad_tokens - N))

    # ---- path selection -----------------------------------------------------
    vocab_pad = _round_up(vocab, 256)             # MXU-aligned K dimension
    onehot_bytes = (
        2 * vocab_pad * d_model * itemsize        # table block (auto double-buffer)
        + 2 * tm * d_model * itemsize             # output tiles (double-buffer)
        + 2 * tm * 4                              # id tiles
        + tm * vocab_pad * (4 + itemsize)         # iota/compare + one-hot temporaries
        + tm * d_model * 4                        # f32 matmul result
    )
    small_table = (vocab_pad * d_model <= (1 << 22)) and (onehot_bytes <= budget)
    if use_gather is None:
        use_gather = not small_table

    if not use_gather:
        # ---- Path A: VMEM-resident table, one one-hot matmul per token tile.
        idx2 = idx.reshape(n_pad_tokens, 1)
        table_p = table
        if vocab_pad != vocab:
            table_p = jnp.pad(table, ((0, vocab_pad - vocab), (0, 0)))
        vmem_limit = int(min(max(onehot_bytes + (4 << 20), 32 << 20), hw_vmem_limit))
        out = pl.pallas_call(
            functools.partial(_onehot_kernel, scale=scale),
            out_shape=jax.ShapeDtypeStruct((N, d_model), out_dtype),
            grid_spec=pltpu.PrefetchScalarGridSpec(
                num_scalar_prefetch=0,
                grid=(num_token_tiles,),
                in_specs=[
                    pl.BlockSpec((tm, 1), lambda i: (i, 0)),               # ids
                    pl.BlockSpec((vocab_pad, d_model), lambda i: (0, 0)),  # table
                ],
                out_specs=pl.BlockSpec((tm, d_model), lambda i: (i, 0)),
            ),
            compiler_params=pltpu.CompilerParams(
                dimension_semantics=("parallel",),
                vmem_limit_bytes=vmem_limit,
            ),
        )(idx2, table_p)
    else:
        # ---- Path B: HBM table, per-row DMA gather, double-buffered tiles.
        idx_safe = jnp.clip(idx, 0, vocab - 1)    # keep row DMAs in bounds
        gather_bytes = (
            2 * tm * d_model * itemsize           # row_buf (double buffer)
            + 2 * tm * d_model * itemsize         # output tiles (double-buffer)
            + tm * d_model * 4                    # f32 scale temporary
        )
        vmem_limit = int(min(max(gather_bytes + (8 << 20), 32 << 20), hw_vmem_limit))
        out = pl.pallas_call(
            functools.partial(_gather_kernel, tm=tm, scale=scale),
            out_shape=jax.ShapeDtypeStruct((N, d_model), out_dtype),
            grid_spec=pltpu.PrefetchScalarGridSpec(
                num_scalar_prefetch=1,                          # ids -> SMEM
                grid=(num_token_tiles,),
                in_specs=[pl.BlockSpec(memory_space=pl.ANY)],   # table stays in HBM
                out_specs=pl.BlockSpec((tm, d_model), lambda i, ids: (i, 0)),
                scratch_shapes=[
                    pltpu.VMEM((2, tm, d_model), out_dtype),
                    pltpu.SemaphoreType.DMA((2,)),
                ],
            ),
            compiler_params=pltpu.CompilerParams(
                # Cross-tile prefetch (tile i+1 issued at step i) requires
                # in-order grid execution on one core.
                dimension_semantics=("arbitrary",),
                vmem_limit_bytes=vmem_limit,
            ),
        )(idx_safe, table)

    return out.reshape(B, S, d_model)


if __name__ == "__main__":
    vocab = 32
    d_model = 128
    B, S = 2, 8

    key = jax.random.PRNGKey(0)
    k_tab, k_idx = jax.random.split(key)

    # nn.Embedding default init: N(0, 1)
    table = jax.random.normal(k_tab, (vocab, d_model), dtype=jnp.float32)
    x = jax.random.randint(k_idx, (B, S), minval=0, maxval=vocab, dtype=jnp.int32)
    ref = jnp.take(table, x, axis=0) * math.sqrt(d_model)

    # Path A: small vocab -> VMEM-resident one-hot matmul.
    out_a = jax.block_until_ready(embedding_forward(x, table))
    assert out_a.shape == (B, S, d_model)
    assert jnp.allclose(out_a, ref, atol=1e-5, rtol=1e-5)

    # Path B forced: SMEM-prefetched ids + HBM table + per-row DMA gather.
    out_b = jax.block_until_ready(embedding_forward(x, table, use_gather=True))
    assert jnp.allclose(out_b, ref, atol=1e-5, rtol=1e-5)

    # Ragged token count exercises the masked OOB last tile on both paths.
    k2a, _ = jax.random.split(jax.random.PRNGKey(1))
    x2 = jax.random.randint(k2a, (3, 50), minval=0, maxval=vocab, dtype=jnp.int32)
    ref2 = jnp.take(table, x2, axis=0) * math.sqrt(d_model)
    out2a = jax.block_until_ready(embedding_forward(x2, table))
    out2b = jax.block_until_ready(embedding_forward(x2, table, use_gather=True))
    assert out2a.shape == (3, 50, d_model)
    assert jnp.allclose(out2a, ref2, atol=1e-5, rtol=1e-5)
    assert jnp.allclose(out2b, ref2, atol=1e-5, rtol=1e-5)

    print("KERNEL_OK")
</pallas_src>

<mosaic_0001>
module attributes {stable_mosaic.version = 11 : i64} {
  func.func @_onehot_kernel(%arg0: i32, %arg1: memref<16x1xi32, #tpu.memory_space<vmem>>, %arg2: memref<256x128xf32, #tpu.memory_space<vmem>>, %arg3: memref<16x128xf32, #tpu.memory_space<vmem>>) attributes {dimension_semantics = [#tpu.dimension_semantics<parallel>], iteration_bounds = array<i64: 1>, scalar_prefetch = 0 : i64, scratch_operands = 0 : i64, tpu.core_type = #tpu.core_type<tc>, window_params = [{transform_indices = @transform_0, window_bounds = array<i64: 16, 1>}, {pipeline_mode = #tpu.pipeline_mode<synchronous>, transform_indices = @transform_1, window_bounds = array<i64: 256, 128>}, {transform_indices = @transform_2, window_bounds = array<i64: 16, 128>}]} {
    %c0 = arith.constant 0 : index
    %c0_0 = arith.constant 0 : index
    %0 = vector.load %arg1[%c0, %c0_0] : memref<16x1xi32, #tpu.memory_space<vmem>>, vector<16x1xi32>
    %1 = tpu.iota {dimensions = array<i32: 1>} : vector<16x256xi32>
    %2 = vector.broadcast %0 : vector<16x1xi32> to vector<16x256xi32>
    %3 = arith.cmpi eq, %1, %2 : vector<16x256xi32>
    %4 = arith.extui %3 : vector<16x256xi1> to vector<16x256xi32>
    %5 = arith.sitofp %4 : vector<16x256xi32> to vector<16x256xf32>
    %c0_1 = arith.constant 0 : index
    %c0_2 = arith.constant 0 : index
    %6 = vector.load %arg2[%c0_1, %c0_2] : memref<256x128xf32, #tpu.memory_space<vmem>>, vector<256x128xf32>
    %cst = arith.constant dense<0.000000e+00> : vector<16x128xf32>
    %7 = tpu.matmul %5, %6, %cst {dimension_numbers = #tpu.dot_dimension_numbers<[1], [0], [0], [1], [0, 0, 1, 1], [], []>} : vector<16x256xf32>, vector<256x128xf32>, vector<16x128xf32> -> vector<16x128xf32>
    %cst_3 = arith.constant 11.3137083 : f32
    %8 = vector.broadcast %cst_3 : f32 to vector<16x128xf32>
    %9 = arith.mulf %7, %8 : vector<16x128xf32>
    %c0_4 = arith.constant 0 : index
    %c0_5 = arith.constant 0 : index
    %10 = vector.load %arg3[%c0_4, %c0_5] : memref<16x128xf32, #tpu.memory_space<vmem>>, vector<16x128xf32>
    tpu.vector_store %arg3[%c0_4, %c0_5], %9 {strides = array<i32>} : memref<16x128xf32, #tpu.memory_space<vmem>>, vector<16x128xf32>,
    return
  }
  func.func @transform_0(%arg0: i32) -> (i32, i32) {
    %c0_i32 = arith.constant 0 : i32
    %c0_i32_0 = arith.constant 0 : i32
    return %arg0, %c0_i32 : i32, i32
  }
  func.func @transform_1(%arg0: i32) -> (i32, i32) {
    %c0_i32 = arith.constant 0 : i32
    %c0_i32_0 = arith.constant 0 : i32
    %c0_i32_1 = arith.constant 0 : i32
    return %c0_i32, %c0_i32_0 : i32, i32
  }
  func.func @transform_2(%arg0: i32) -> (i32, i32) {
    %c0_i32 = arith.constant 0 : i32
    %c0_i32_0 = arith.constant 0 : i32
    return %arg0, %c0_i32 : i32, i32
  }
}

</mosaic_0001>

<llo_original>
// kernel: tpu_custom_call.1
$region0: #{tpu_custom_call.1}
  #allocation0 [shape = 'u32[]', space=smem, size = 0x4, offset = 0x4, fixed_abs, tag = 'smem constant byte address 0x4 - core index']
  #allocation1 [shape = 'u32[72,128]{1,0:T(1,128)}', space=vmem, size = 0x9000, scoped, tag = 'internal scratch']
  %s0 = inlined_call_operand.vmem [shape: s32[16,1], index: 0, kind: input, shape index: {}]
  %s1 = inlined_call_operand.hbm [shape: f32[256,128], index: 1, kind: input, shape index: {}]
  %s2 = inlined_call_operand.hbm [shape: f32[16,128], index: 2, kind: output, shape index: {}]
  %s3 = sld [smem:[#allocation0]]
  $region22: #{tpu_custom_call.1} parent=0
    _
  %s5 = ssub.s32 1, %s3
  %s6 = scalar_select 0, %s5, %s3
  $region1: #{tpu_custom_call.1} parent=0
    #allocation2 [shape = 'u8[131072]{0}', space=vmem, size = 0x20000, scoped, tag = 'input window, operand 1, single buffered']
    #allocation3 [shape = 's32[1]{0}', space=sflag, size = 0x4, scoped, tag = 'scoped memory for tpu_custom_call.1']
    #allocation4 [shape = 's32[1]{0}', space=sflag, size = 0x4, scoped, tag = 'scoped memory for tpu_custom_call.1']
    #allocation5 [shape = 'u8[8192]{0}', space=vmem, size = 0x2000, scoped, tag = 'output window, operand 0, single buffered']
    %7 = vsyncpa [#allocation3], 0
    %8 = vsyncpa [#allocation4], 0
    // Predicated region
    $region2: #{tpu_custom_call.1} parent=1 // pred_check
      _
    $region3: #{tpu_custom_call.1} parent=1 // pred_check_branch
      %10 = sbr.rel (0) target = $region5
    $region4: #{tpu_custom_call.1} parent=1 // pred_region
      _
    $region5: #{tpu_custom_call.1} parent=1 // pred_fallthru
      _
    // Predicated region
    $region6: #{tpu_custom_call.1} parent=1 // pred_check
      _
    $region7: #{tpu_custom_call.1} parent=1 // pred_check_branch
      %12 = sbr.rel (0) target = $region9
    $region8: #{tpu_custom_call.1} parent=1 // pred_region
      %14 = vsyncadd [#allocation3], 0
      %s15 = sshll.u32 %s1, 4
      %s16 = int_to_ptr.hbm [resolvable:$true] %s15
      %s17 = sshll.u32 [#allocation2], 4
      %s18 = int_to_ptr.vmem [resolvable:$true] %s17
      %23 = dma.hbm_to_vmem [thread:$0]  %s16, 4096, %s18, [#allocation3], 128, 128, 8
    $region9: #{tpu_custom_call.1} parent=1 // pred_fallthru
      _
    // Predicated region
    $region10: #{tpu_custom_call.1} parent=1 // pred_check
      _
    $region11: #{tpu_custom_call.1} parent=1 // pred_check_branch
      %25 = sbr.rel (0) target = $region13
    $region12: #{tpu_custom_call.1} parent=1 // pred_region
      %27 = dma.done [#allocation3], 4096
    $region13: #{tpu_custom_call.1} parent=1 // pred_fallthru
      _
    %v28 = vld [vmem:[%s0] sm:$0xff]
    %v29 = vld [vmem:[%s0 + $0x8] sm:$0xff]
    %v30 = vlaneseq
    %v31 = vand.u32 %v30, 127
    %v32 = vadd.s32 %v31, 128
    %33 = vset.pattern.permute.xlu0 0
    %34 = vperm.xlu0 %33, %v28
    %v35 = vpop.permute.xlu0 %34
    %36 = vset.pattern.permute.xlu0 0
    %37 = vperm.xlu0 %36, %v29
    %v38 = vpop.permute.xlu0 %37
    %vm39 = vcmp.eq.s32.totalorder %v31, %v35
    %vm40 = vcmp.eq.s32.totalorder %v32, %v35
    %vm41 = vcmp.eq.s32.totalorder %v31, %v38
    %vm42 = vcmp.eq.s32.totalorder %v32, %v38
    %v43 = vsel %vm39, 1, 0
    %v44 = vsel %vm40, 1, 0
    %v45 = vsel %vm41, 1, 0
    %v46 = vsel %vm42, 1, 0
    %v47 = vcvt.s32.f32 %v43
    %v48 = vcvt.s32.f32 %v44
    %v49 = vcvt.s32.f32 %v45
    %v50 = vcvt.s32.f32 %v46
    %v51 = vld [vmem:[#allocation2] sm:$0xff]
    %v52 = vld [vmem:[#allocation2 + $0x8] sm:$0xff]
    %v53 = vld [vmem:[#allocation2 + $0x10] sm:$0xff]
    %v54 = vld [vmem:[#allocation2 + $0x18] sm:$0xff]
    %v55 = vld [vmem:[#allocation2 + $0x20] sm:$0xff]
    %v56 = vld [vmem:[#allocation2 + $0x28] sm:$0xff]
    %v57 = vld [vmem:[#allocation2 + $0x30] sm:$0xff]
    %v58 = vld [vmem:[#allocation2 + $0x38] sm:$0xff]
    %v59 = vld [vmem:[#allocation2 + $0x40] sm:$0xff]
    %v60 = vld [vmem:[#allocation2 + $0x48] sm:$0xff]
    %v61 = vld [vmem:[#allocation2 + $0x50] sm:$0xff]
    %v62 = vld [vmem:[#allocation2 + $0x58] sm:$0xff]
    %v63 = vld [vmem:[#allocation2 + $0x60] sm:$0xff]
    %v64 = vld [vmem:[#allocation2 + $0x68] sm:$0xff]
    %v65 = vld [vmem:[#allocation2 + $0x70] sm:$0xff]
    %v66 = vld [vmem:[#allocation2 + $0x78] sm:$0xff]
    %v67 = vld [vmem:[#allocation2 + $0x80] sm:$0xff]
    %v68 = vld [vmem:[#allocation2 + $0x88] sm:$0xff]
    %v69 = vld [vmem:[#allocation2 + $0x90] sm:$0xff]
    %v70 = vld [vmem:[#allocation2 + $0x98] sm:$0xff]
    %v71 = vld [vmem:[#allocation2 + $0xa0] sm:$0xff]
    %v72 = vld [vmem:[#allocation2 + $0xa8] sm:$0xff]
    %v73 = vld [vmem:[#allocation2 + $0xb0] sm:$0xff]
    %v74 = vld [vmem:[#allocation2 + $0xb8] sm:$0xff]
    %v75 = vld [vmem:[#allocation2 + $0xc0] sm:$0xff]
    %v76 = vld [vmem:[#allocation2 + $0xc8] sm:$0xff]
    %v77 = vld [vmem:[#allocation2 + $0xd0] sm:$0xff]
    %v78 = vld [vmem:[#allocation2 + $0xd8] sm:$0xff]
    %v79 = vld [vmem:[#allocation2 + $0xe0] sm:$0xff]
    %v80 = vld [vmem:[#allocation2 + $0xe8] sm:$0xff]
    %v81 = vld [vmem:[#allocation2 + $0xf0] sm:$0xff]
    %v82 = vld [vmem:[#allocation2 + $0xf8] sm:$0xff]
    %83 = vmatpush.msra.mxu0 %v66
    %84 = vmatpush.msra.mxu0 %v65
    %85 = vmatpush.msra.mxu0 %v64
    %86 = vmatpush.msra.mxu0 %v63
    %87 = vmatpush.msra.mxu0 %v62
    %88 = vmatpush.msra.mxu0 %v61
    %89 = vmatpush.msra.mxu0 %v60
    %90 = vmatpush.msra.mxu0 %v59
    %91 = vmatpush.msra.mxu0 %v58
    %92 = vmatpush.msra.mxu0 %v57
    %93 = vmatpush.msra.mxu0 %v56
    %94 = vmatpush.msra.mxu0 %v55
    %95 = vmatpush.msra.mxu0 %v54
    %96 = vmatpush.msra.mxu0 %v53
    %97 = vmatpush.msra.mxu0 %v52
    %98 = vmatpush.msra.mxu0 %v51
    %99 = vmatmul.f32.gmra.mxu0 %v47
    %v100 = vpop.f32.mrf.mxu0
    %v101 = vadd.f32 0.0, %v100
    %102 = vmatmul.f32.gmra.mxu0 %v49
    %v103 = vpop.f32.mrf.mxu0
    %v104 = vadd.f32 0.0, %v103
    %105 = vdwg.mxu0
    %106 = vmatpush.msra.mxu0 %v82
    %107 = vmatpush.msra.mxu0 %v81
    %108 = vmatpush.msra.mxu0 %v80
    %109 = vmatpush.msra.mxu0 %v79
    %110 = vmatpush.msra.mxu0 %v78
    %111 = vmatpush.msra.mxu0 %v77
    %112 = vmatpush.msra.mxu0 %v76
    %113 = vmatpush.msra.mxu0 %v75
    %114 = vmatpush.msra.mxu0 %v74
    %115 = vmatpush.msra.mxu0 %v73
    %116 = vmatpush.msra.mxu0 %v72
    %117 = vmatpush.msra.mxu0 %v71
    %118 = vmatpush.msra.mxu0 %v70
    %119 = vmatpush.msra.mxu0 %v69
    %120 = vmatpush.msra.mxu0 %v68
    %121 = vmatpush.msra.mxu0 %v67
    %122 = vmatmul.f32.gmra.mxu0 %v48
    %v123 = vpop.f32.mrf.mxu0
    %v124 = vadd.f32 %v101, %v123
    %125 = vmatmul.f32.gmra.mxu0 %v50
    %v126 = vpop.f32.mrf.mxu0
    %v127 = vadd.f32 %v104, %v126
    %128 = vdwg.mxu0
    %v129 = vmul.f32 %v124, 11.313708
    %v130 = vmul.f32 %v127, 11.313708
    %131 = vst [vmem:[#allocation5] sm:$0xff] %v129
    %132 = vst [vmem:[#allocation5 + $0x8] sm:$0xff] %v130
    // Predicated region
    $region14: #{tpu_custom_call.1} parent=1 // pred_check
      _
    $region15: #{tpu_custom_call.1} parent=1 // pred_check_branch
      %134 = sbr.rel (0) target = $region17
    $region16: #{tpu_custom_call.1} parent=1 // pred_region
      %136 = vsyncadd [#allocation4], 0
      %s137 = sshll.u32 [#allocation5], 4
      %s138 = int_to_ptr.vmem [resolvable:$true] %s137
      %s139 = sshll.u32 %s2, 4
      %s140 = int_to_ptr.hbm [resolvable:$true] %s139
      %145 = dma.vmem_to_hbm [thread:$0]  %s138, 256, %s140, [#allocation4], 128, 128, 8
    $region17: #{tpu_custom_call.1} parent=1 // pred_fallthru
      _
    // Predicated region
    $region18: #{tpu_custom_call.1} parent=1 // pred_check
      _
    $region19: #{tpu_custom_call.1} parent=1 // pred_check_branch
      %147 = sbr.rel (0) target = $region21
    $region20: #{tpu_custom_call.1} parent=1 // pred_region
      %149 = dma.done [#allocation4], 256
    $region21: #{tpu_custom_call.1} parent=1 // pred_fallthru
      _
    %150 = vsyncpa [#allocation3], 1
    %151 = vsyncpa [#allocation4], 1

</llo_original>
